<compile_context>
chip_gen: v7x
topology: tpu7x:2x2x1
jax: 0.10.0
libtpu: 0.0.40
codegen_flags: <defaults>
</compile_context>

<pallas_src>
import functools

import jax
import jax.numpy as jnp
from jax.experimental import pallas as pl
from jax.experimental.pallas import tpu as pltpu


def _round_up(x, m):
    return ((x + m - 1) // m) * m


def value_net_kernel(x_ref, w1_ref, b1_ref, w2t_ref, b2_ref, o_ref):
    # fc1 + ReLU: f32 MXU matmul (K is tiny, MXU cost irrelevant), f32 VPU adds.
    h = jnp.dot(x_ref[...], w1_ref[...], preferred_element_type=jnp.float32)  # (tb, H)
    h = jnp.maximum(h + b1_ref[...], 0.0)
    # fc2: broadcast multiply (VPU) + lane reduction (XLU) -> (tb, 1) column.
    v = jnp.sum(h * w2t_ref[...], axis=-1, keepdims=True) + b2_ref[...]       # (tb, 1)
    o_ref[...] = v.astype(o_ref.dtype)


@functools.partial(jax.jit, static_argnames=("tb",))
def value_net_forward(x, w1, b1, w2, b2, *, tb=None):
    """x: (B, S) f32; w1: (S, H); b1: (1, H); w2: (H, 1); b2: (1, 1). Returns (B, 1) f32."""
    batch, state_dim = x.shape
    hidden_dim = w1.shape[1]
    out_dim = w2.shape[1]  # == 1 for ValueNet

    # w2 as a lane-major row vector for the in-kernel mul + reduce.
    w2t = w2.reshape(1, hidden_dim)

    # --- batch tile: multiple of 16 sublanes, big enough to amortize per-step
    #     overhead, capped so large batches split into >= 2 grid steps (v7x TCs).
    if tb is None:
        tb = min(4096, _round_up(batch, 16))
        if batch >= 512:
            tb = min(tb, _round_up(pl.cdiv(batch, 2), 16))
    tb = max(16, _round_up(tb, 16))

    padded_batch = _round_up(batch, tb)
    if padded_batch != batch:
        # Padded rows compute relu(b1) . w2 + b2 (garbage) and are sliced off below.
        x = jnp.pad(x, ((0, padded_batch - batch), (0, 0)))

    grid = (padded_batch // tb,)
    out = pl.pallas_call(
        value_net_kernel,
        out_shape=jax.ShapeDtypeStruct((padded_batch, out_dim), jnp.float32),
        grid_spec=pltpu.PrefetchScalarGridSpec(
            num_scalar_prefetch=0,
            grid=grid,
            in_specs=[
                pl.BlockSpec((tb, state_dim), lambda i: (i, 0)),          # x tile streams
                pl.BlockSpec((state_dim, hidden_dim), lambda i: (0, 0)),  # w1 resident
                pl.BlockSpec((1, hidden_dim), lambda i: (0, 0)),          # b1 resident
                pl.BlockSpec((1, hidden_dim), lambda i: (0, 0)),          # w2^T resident
                pl.BlockSpec((1, out_dim), lambda i: (0, 0)),             # b2 resident
            ],
            out_specs=pl.BlockSpec((tb, out_dim), lambda i: (i, 0)),
        ),
        compiler_params=pltpu.CompilerParams(
            dimension_semantics=("parallel",),   # shard batch grid across TCs on v7x
            vmem_limit_bytes=32 * 1024 * 1024,   # modest; tiles are far below this
        ),
    )(x, w1, b1, w2t, b2)

    return out[:batch]


def init_params(key, state_dim, hidden_dim):
    # Mimics torch.nn.Linear U(-1/sqrt(fan_in), 1/sqrt(fan_in)) init; weights stored
    # as (in_features, out_features) (PyTorch (out, in) pre-transposed).
    k1, k2, k3, k4 = jax.random.split(key, 4)
    bound1 = 1.0 / (state_dim ** 0.5)
    bound2 = 1.0 / (hidden_dim ** 0.5)
    w1 = jax.random.uniform(k1, (state_dim, hidden_dim), jnp.float32, -bound1, bound1)
    b1 = jax.random.uniform(k2, (1, hidden_dim), jnp.float32, -bound1, bound1)
    w2 = jax.random.uniform(k3, (hidden_dim, 1), jnp.float32, -bound2, bound2)
    b2 = jax.random.uniform(k4, (1, 1), jnp.float32, -bound2, bound2)
    return w1, b1, w2, b2


def _reference(x, w1, b1, w2, b2):
    h = jnp.maximum(x @ w1 + b1, 0.0)
    return h @ w2 + b2


if __name__ == "__main__":
    state_dim, hidden_dim = 16, 32
    key = jax.random.PRNGKey(0)
    key_x, key_x2, key_p = jax.random.split(key, 3)
    w1, b1, w2, b2 = init_params(key_p, state_dim, hidden_dim)

    # Small primary check (matches the module's typical per-step usage).
    batch = 8
    x = jax.random.normal(key_x, (batch, state_dim), jnp.float32)
    out = jax.block_until_ready(value_net_forward(x, w1, b1, w2, b2))
    ref = _reference(x, w1, b1, w2, b2)
    assert out.shape == (batch, 1), f"bad shape {out.shape}"
    # f32 end-to-end now -> tight tolerance vs. the f32 reference.
    assert jnp.allclose(out, ref, atol=1e-4, rtol=1e-4), "mismatch vs reference (batch=8)"

    # Larger, non-multiple-of-tile batch to exercise the batch grid + padding path.
    batch2, tb2 = 200, 64
    x2 = jax.random.normal(key_x2, (batch2, state_dim), jnp.float32)
    out2 = jax.block_until_ready(value_net_forward(x2, w1, b1, w2, b2, tb=tb2))
    ref2 = _reference(x2, w1, b1, w2, b2)
    assert out2.shape == (batch2, 1), f"bad shape {out2.shape}"
    assert jnp.allclose(out2, ref2, atol=1e-4, rtol=1e-4), "mismatch vs reference (batch=200)"

    print("KERNEL_OK")
</pallas_src>

<mosaic_0001>
module attributes {stable_mosaic.version = 11 : i64} {
  func.func @value_net_kernel(%arg0: i32, %arg1: memref<16x16xf32, #tpu.memory_space<vmem>>, %arg2: memref<16x32xf32, #tpu.memory_space<vmem>>, %arg3: memref<1x32xf32, #tpu.memory_space<vmem>>, %arg4: memref<1x32xf32, #tpu.memory_space<vmem>>, %arg5: memref<1x1xf32, #tpu.memory_space<vmem>>, %arg6: memref<16x1xf32, #tpu.memory_space<vmem>>) attributes {dimension_semantics = [#tpu.dimension_semantics<parallel>], iteration_bounds = array<i64: 1>, scalar_prefetch = 0 : i64, scratch_operands = 0 : i64, tpu.core_type = #tpu.core_type<tc>, window_params = [{transform_indices = @transform_0, window_bounds = array<i64: 16, 16>}, {pipeline_mode = #tpu.pipeline_mode<synchronous>, transform_indices = @transform_1, window_bounds = array<i64: 16, 32>}, {pipeline_mode = #tpu.pipeline_mode<synchronous>, transform_indices = @transform_2, window_bounds = array<i64: 1, 32>}, {pipeline_mode = #tpu.pipeline_mode<synchronous>, transform_indices = @transform_3, window_bounds = array<i64: 1, 32>}, {pipeline_mode = #tpu.pipeline_mode<synchronous>, transform_indices = @transform_4, window_bounds = array<i64: 1, 1>}, {transform_indices = @transform_5, window_bounds = array<i64: 16, 1>}]} {
    %c0 = arith.constant 0 : index
    %c0_0 = arith.constant 0 : index
    %0 = vector.load %arg1[%c0, %c0_0] : memref<16x16xf32, #tpu.memory_space<vmem>>, vector<16x16xf32>
    %c0_1 = arith.constant 0 : index
    %c0_2 = arith.constant 0 : index
    %1 = vector.load %arg2[%c0_1, %c0_2] : memref<16x32xf32, #tpu.memory_space<vmem>>, vector<16x32xf32>
    %cst = arith.constant dense<0.000000e+00> : vector<16x32xf32>
    %2 = tpu.matmul %0, %1, %cst {dimension_numbers = #tpu.dot_dimension_numbers<[1], [0], [0], [1], [0, 0, 1, 1], [], []>} : vector<16x16xf32>, vector<16x32xf32>, vector<16x32xf32> -> vector<16x32xf32>
    %c0_3 = arith.constant 0 : index
    %c0_4 = arith.constant 0 : index
    %3 = vector.load %arg3[%c0_3, %c0_4] : memref<1x32xf32, #tpu.memory_space<vmem>>, vector<1x32xf32>
    %4 = vector.broadcast %3 : vector<1x32xf32> to vector<16x32xf32>
    %5 = arith.addf %2, %4 : vector<16x32xf32>
    %cst_5 = arith.constant 0.000000e+00 : f32
    %6 = vector.broadcast %cst_5 : f32 to vector<16x32xf32>
    %7 = arith.maximumf %5, %6 : vector<16x32xf32>
    %c0_6 = arith.constant 0 : index
    %c0_7 = arith.constant 0 : index
    %8 = vector.load %arg4[%c0_6, %c0_7] : memref<1x32xf32, #tpu.memory_space<vmem>>, vector<1x32xf32>
    %9 = vector.broadcast %8 : vector<1x32xf32> to vector<16x32xf32>
    %10 = arith.mulf %7, %9 : vector<16x32xf32>
    %cst_8 = arith.constant dense<0.000000e+00> : vector<16xf32>
    %11 = vector.multi_reduction <add>, %10, %cst_8 [1] : vector<16x32xf32> to vector<16xf32>
    %12 = vector.shape_cast %11 : vector<16xf32> to vector<16x1xf32>
    %c0_9 = arith.constant 0 : index
    %c0_10 = arith.constant 0 : index
    %13 = vector.load %arg5[%c0_9, %c0_10] : memref<1x1xf32, #tpu.memory_space<vmem>>, vector<1x1xf32>
    %14 = vector.broadcast %13 : vector<1x1xf32> to vector<16x1xf32>
    %15 = arith.addf %12, %14 : vector<16x1xf32>
    %c0_11 = arith.constant 0 : index
    %c0_12 = arith.constant 0 : index
    %16 = vector.load %arg6[%c0_11, %c0_12] : memref<16x1xf32, #tpu.memory_space<vmem>>, vector<16x1xf32>
    tpu.vector_store %arg6[%c0_11, %c0_12], %15 {strides = array<i32>} : memref<16x1xf32, #tpu.memory_space<vmem>>, vector<16x1xf32>,
    return
  }
  func.func @transform_0(%arg0: i32) -> (i32, i32) {
    %c0_i32 = arith.constant 0 : i32
    %c0_i32_0 = arith.constant 0 : i32
    return %arg0, %c0_i32 : i32, i32
  }
  func.func @transform_1(%arg0: i32) -> (i32, i32) {
    %c0_i32 = arith.constant 0 : i32
    %c0_i32_0 = arith.constant 0 : i32
    %c0_i32_1 = arith.constant 0 : i32
    return %c0_i32, %c0_i32_0 : i32, i32
  }
  func.func @transform_2(%arg0: i32) -> (i32, i32) {
    %c0_i32 = arith.constant 0 : i32
    %c0_i32_0 = arith.constant 0 : i32
    %c0_i32_1 = arith.constant 0 : i32
    return %c0_i32, %c0_i32_0 : i32, i32
  }
  func.func @transform_3(%arg0: i32) -> (i32, i32) {
    %c0_i32 = arith.constant 0 : i32
    %c0_i32_0 = arith.constant 0 : i32
    %c0_i32_1 = arith.constant 0 : i32
    return %c0_i32, %c0_i32_0 : i32, i32
  }
  func.func @transform_4(%arg0: i32) -> (i32, i32) {
    %c0_i32 = arith.constant 0 : i32
    %c0_i32_0 = arith.constant 0 : i32
    %c0_i32_1 = arith.constant 0 : i32
    return %c0_i32, %c0_i32_0 : i32, i32
  }
  func.func @transform_5(%arg0: i32) -> (i32, i32) {
    %c0_i32 = arith.constant 0 : i32
    %c0_i32_0 = arith.constant 0 : i32
    return %arg0, %c0_i32 : i32, i32
  }
}

</mosaic_0001>

<llo_original>
// kernel: value_net_forward.1
$region0: #{value_net_forward.1}
  #allocation0 [shape = 'u32[]', space=smem, size = 0x4, offset = 0x4, fixed_abs, tag = 'smem constant byte address 0x4 - core index']
  #allocation1 [shape = 'u32[144,128]{1,0:T(1,128)}', space=vmem, size = 0x12000, scoped, tag = 'internal scratch']
  #allocation2 [shape = 'f32[1,1]{1,0:T(1,128)S(1)}', space=vmem, size = 0x200, scoped, tag = 'scoped memory for value_net_forward.1']
  %s0 = inlined_call_operand.vmem [shape: f32[16,16], index: 0, kind: input, shape index: {}]
  %s1 = inlined_call_operand.vmem [shape: f32[16,32], index: 1, kind: input, shape index: {}]
  %s2 = inlined_call_operand.vmem [shape: f32[1,32], index: 2, kind: input, shape index: {}]
  %s3 = inlined_call_operand.vmem [shape: f32[1,32], index: 3, kind: input, shape index: {}]
  %s4 = inlined_call_operand.<no memory space> [shape: f32[1,1], index: 4, kind: input, shape index: {}]
  %s5 = inlined_call_operand.vmem [shape: f32[16,1], index: 5, kind: output, shape index: {}]
  %s6 = sld [smem:[#allocation0]]
  $region30: #{value_net_forward.1} parent=0
    _
  %s8 = ssub.s32 1, %s6
  %s9 = scalar_select 0, %s8, %s6
  %v10 = vstv %s4
  %11 = vst [vmem:[#allocation2] sm:$0x1] %v10
  // Predicated region
  $region2: #{value_net_forward.1} parent=0 // pred_check
    _
  $region3: #{value_net_forward.1} parent=0 // pred_check_branch
    %13 = sbr.rel (0) target = $region5
  $region4: #{value_net_forward.1} parent=0 // pred_region
    _
  $region5: #{value_net_forward.1} parent=0 // pred_fallthru
    _
  // Predicated region
  $region6: #{value_net_forward.1} parent=0 // pred_check
    _
  $region7: #{value_net_forward.1} parent=0 // pred_check_branch
    %15 = sbr.rel (0) target = $region9
  $region8: #{value_net_forward.1} parent=0 // pred_region
    _
  $region9: #{value_net_forward.1} parent=0 // pred_fallthru
    _
  // Predicated region
  $region10: #{value_net_forward.1} parent=0 // pred_check
    _
  $region11: #{value_net_forward.1} parent=0 // pred_check_branch
    %17 = sbr.rel (0) target = $region13
  $region12: #{value_net_forward.1} parent=0 // pred_region
    _
  $region13: #{value_net_forward.1} parent=0 // pred_fallthru
    _
  // Predicated region
  $region14: #{value_net_forward.1} parent=0 // pred_check
    _
  $region15: #{value_net_forward.1} parent=0 // pred_check_branch
    %19 = sbr.rel (0) target = $region17
  $region16: #{value_net_forward.1} parent=0 // pred_region
    _
  $region17: #{value_net_forward.1} parent=0 // pred_fallthru
    _
  // Predicated region
  $region18: #{value_net_forward.1} parent=0 // pred_check
    _
  $region19: #{value_net_forward.1} parent=0 // pred_check_branch
    %21 = sbr.rel (0) target = $region21
  $region20: #{value_net_forward.1} parent=0 // pred_region
    _
  $region21: #{value_net_forward.1} parent=0 // pred_fallthru
    _
  %v22 = vld [vmem:[%s0] sm:$0xff]
  %v23 = vld [vmem:[%s0 + $0x8] sm:$0xff]
  %v24 = vld [vmem:[%s1] sm:$0xff]
  %v25 = vld [vmem:[%s1 + $0x8] sm:$0xff]
  %v26 = vld [vmem:[%s2] sm:$0x1]
  %v28 = vlaneseq
  %v29 = vshrl.u32 %v28, 7
  %v30 = vsub.s32 0, %v29
  %v31 = vrot.slane %v26, %v30
  %vm33 = vcmask 130048
  %v35 = vsel %vm33, %v22, 0
  %v38 = vsel %vm33, %v23, 0
  %40 = vmatprep.subr.mxu0 0.0
  %41 = vmatpush1.msra.mxu0 %v24
  %42 = vmatprep.subr.mxu0 0.0
  %43 = vmatpush1.msra.mxu0 %v25
  %44 = vmatprep.subr.mxu0 0.0
  %45 = vmatpush1.msra.mxu0 0.0
  %46 = vmatprep.subr.mxu0 0.0
  %47 = vmatpush1.msra.mxu0 0.0
  %48 = vmatprep.subr.mxu0 0.0
  %49 = vmatpush1.msra.mxu0 0.0
  %50 = vmatprep.subr.mxu0 0.0
  %51 = vmatpush1.msra.mxu0 0.0
  %52 = vmatprep.subr.mxu0 0.0
  %53 = vmatpush1.msra.mxu0 0.0
  %54 = vmatprep.subr.mxu0 0.0
  %55 = vmatpush1.msra.mxu0 0.0
  %56 = vmatprep.subr.mxu0 0.0
  %57 = vmatpush1.msra.mxu0 0.0
  %58 = vmatprep.subr.mxu0 0.0
  %59 = vmatpush1.msra.mxu0 0.0
  %60 = vmatprep.subr.mxu0 0.0
  %61 = vmatpush1.msra.mxu0 0.0
  %62 = vmatprep.subr.mxu0 0.0
  %63 = vmatpush1.msra.mxu0 0.0
  %64 = vmatprep.subr.mxu0 0.0
  %65 = vmatpush1.msra.mxu0 0.0
  %66 = vmatprep.subr.mxu0 0.0
  %67 = vmatpush1.msra.mxu0 0.0
  %68 = vmatprep.subr.mxu0 0.0
  %69 = vmatpush1.msra.mxu0 0.0
  %70 = vmatprep.subr.mxu0 0.0
  %71 = vmatpush1.msra.mxu0 0.0
  %72 = vmatprep.subr.mxu0 0.0
  %73 = vmatpush1.msra.mxu0 0.0
  %74 = vmatprep.subr.mxu0 0.0
  %75 = vmatpush1.msra.mxu0 0.0
  %76 = vmatprep.subr.mxu0 0.0
  %77 = vmatpush1.msra.mxu0 0.0
  %78 = vmatprep.subr.mxu0 0.0
  %79 = vmatpush1.msra.mxu0 0.0
  %80 = vmatprep.subr.mxu0 0.0
  %81 = vmatpush1.msra.mxu0 0.0
  %82 = vmatprep.subr.mxu0 0.0
  %83 = vmatpush1.msra.mxu0 0.0
  %84 = vmatprep.subr.mxu0 0.0
  %85 = vmatpush1.msra.mxu0 0.0
  %86 = vmatprep.subr.mxu0 0.0
  %87 = vmatpush1.msra.mxu0 0.0
  %88 = vmatprep.subr.mxu0 0.0
  %89 = vmatpush1.msra.mxu0 0.0
  %90 = vmatprep.subr.mxu0 0.0
  %91 = vmatpush1.msra.mxu0 0.0
  %92 = vmatprep.subr.mxu0 0.0
  %93 = vmatpush1.msra.mxu0 0.0
  %94 = vmatprep.subr.mxu0 0.0
  %95 = vmatpush1.msra.mxu0 0.0
  %96 = vmatprep.subr.mxu0 0.0
  %97 = vmatpush1.msra.mxu0 0.0
  %98 = vmatprep.subr.mxu0 0.0
  %99 = vmatpush1.msra.mxu0 0.0
  %100 = vmatprep.subr.mxu0 0.0
  %101 = vmatpush1.msra.mxu0 0.0
  %102 = vmatprep.subr.mxu0 0.0
  %103 = vmatpush1.msra.mxu0 0.0
  %104 = vmatprep.mubr.f32.mxu0 0.0
  %105 = vmatmul.mubr.f32.gmra.mrb[0].mxu0 %v35
  %v106 = vpop.f32.mrb[0].mxu0
  %v107 = vadd.f32 %v31, %v106
  %v108 = vpop.f32.mrb[0].mxu0
  %109 = vmatprep.mubr.f32.mxu0 0.0
  %110 = vmatmul.mubr.f32.gmra.mrb[0].mxu0 %v38
  %v111 = vpop.f32.mrb[0].mxu0
  %v112 = vadd.f32 %v31, %v111
  %v113 = vpop.f32.mrb[0].mxu0
  %114 = vdwg.mxu0
  %v115 = vmax.f32 %v107, 0.0
  %v116 = vmax.f32 %v112, 0.0
  %v117 = vld [vmem:[%s3] sm:$0x1]
  %v119 = vlaneseq
  %v120 = vshrl.u32 %v119, 7
  %v121 = vsub.s32 0, %v120
  %v122 = vrot.slane %v117, %v121
  %v124 = vmul.f32 %v115, %v122
  %v125 = vmul.f32 %v116, %v122
  %vm126 = vcmask 261120
  %v127 = vsel %vm126, %v124, 0.0
  %128 = vadd.xlane.f32.xlu0 %v127
  %v129 = vpop.xlane.xlu0 %128
  %v130 = vsel %vm126, %v125, 0.0
  %131 = vadd.xlane.f32.xlu0 %v130
  %v132 = vpop.xlane.xlu0 %131
  %v133 = vld [vmem:[#allocation2] sm:$0x1]
  %v135 = vlaneseq
  %v136 = vshrl.u32 %v135, 7
  %v137 = vsub.s32 0, %v136
  %v138 = vrot.slane %v133, %v137
  %v140 = vadd.f32 %v129, %v138
  %v141 = vadd.f32 %v132, %v138
  %vm142 = vcmask 7168
  %143 = vst.msk [vmem:[%s5] sm:$0xff] %vm142, %v140
  %144 = vst.msk [vmem:[%s5 + $0x8] sm:$0xff] %vm142, %v141
  // Predicated region
  $region22: #{value_net_forward.1} parent=0 // pred_check
    _
  $region23: #{value_net_forward.1} parent=0 // pred_check_branch
    %146 = sbr.rel (0) target = $region25
  $region24: #{value_net_forward.1} parent=0 // pred_region
    _
  $region25: #{value_net_forward.1} parent=0 // pred_fallthru
    _
  // Predicated region
  $region26: #{value_net_forward.1} parent=0 // pred_check
    _
  $region27: #{value_net_forward.1} parent=0 // pred_check_branch
    %148 = sbr.rel (0) target = $region29
  $region28: #{value_net_forward.1} parent=0 // pred_region
    _
  $region29: #{value_net_forward.1} parent=0 // pred_fallthru
    _

</llo_original>
